<compile_context>
chip_gen: v5e
topology: v5e:2x2
jax: 0.10.0
libtpu: 0.0.40
codegen_flags: <defaults>
</compile_context>

<pallas_src>
import numpy as np
import jax
import jax.numpy as jnp
from jax.experimental import pallas as pl
from jax.experimental.pallas import tpu as pltpu


# -----------------------------------------------------------------------------
# Fused kernel: out = ((x @ Wc + bc)^2 @ W1 + b1)^2 @ W2 + b2
#   x  : (tb, 784)   raw pixels (compute dtype, default bf16)
#   Wc : (784, 256)  dense conv matrix, cols in channel-major .view(-1,256) order
#   W1 : (256, 128)  fc1 weight (transposed, zero-padded 64 -> 128 lanes)
#   W2 : (128, 128)  fc2 weight (transposed, zero-padded rows/cols)
#   biases are kept f32 and added to the f32 accumulators.
# -----------------------------------------------------------------------------
def convnet_kernel(x_ref, wc_ref, bc_ref, w1_ref, b1_ref, w2_ref, b2_ref, o_ref):
    # conv-as-GEMM -> lane-dense (tb, 256) activation, f32 accumulation on MXU.
    a = jnp.dot(x_ref[...], wc_ref[...], preferred_element_type=jnp.float32)
    a = a + bc_ref[...]
    a = a * a                                      # square in f32 on VPU
    h = jnp.dot(a.astype(w1_ref.dtype), w1_ref[...],
                preferred_element_type=jnp.float32)
    h = h + b1_ref[...]
    h = h * h                                      # square in f32 on VPU
    o = jnp.dot(h.astype(w2_ref.dtype), w2_ref[...],
                preferred_element_type=jnp.float32)
    o_ref[...] = (o + b2_ref[...]).astype(o_ref.dtype)   # unmasked 128-lane store


# -----------------------------------------------------------------------------
# One-time host-side weight packing (numpy; not part of the jitted forward).
# -----------------------------------------------------------------------------
def pack_params(params, dtype=jnp.bfloat16, lanes=128):
    conv_w, conv_b, fc1_w, fc1_b, fc2_w, fc2_b = (
        np.asarray(p, np.float32) for p in params)
    cout, cin, kh, kw = conv_w.shape
    assert cin == 1
    stride, H, W = 3, 28, 28
    Ho = (H - kh) // stride + 1                    # 8
    Wo = (W - kw) // stride + 1                    # 8
    d_flat = cout * Ho * Wo                        # 256
    assert d_flat == fc1_w.shape[1]

    # Dense conv matrix (784, 256); column order c*64 + oy*8 + ox reproduces
    # PyTorch's (N, C, H, W).view(-1, 256) channel-major flatten exactly.
    wc = np.zeros((H * W, d_flat), np.float32)
    for c in range(cout):
        for oy in range(Ho):
            for ox in range(Wo):
                col = (c * Ho + oy) * Wo + ox
                for ky in range(kh):
                    for kx in range(kw):
                        row = (oy * stride + ky) * W + (ox * stride + kx)
                        wc[row, col] = conv_w[c, 0, ky, kx]
    bc = np.repeat(conv_b, Ho * Wo)[None, :]       # (1, 256)

    # fc1 zero-padded to 128 output lanes; fc2 zero-padded to (128, 128).
    d_h = fc1_w.shape[0]                           # 64
    w1 = np.zeros((d_flat, lanes), np.float32)     # (256, 128)
    w1[:, :d_h] = fc1_w.T
    b1 = np.zeros((1, lanes), np.float32)
    b1[0, :d_h] = fc1_b

    n_out = fc2_w.shape[0]                         # 10
    w2 = np.zeros((lanes, lanes), np.float32)      # (128, 128)
    w2[:d_h, :n_out] = fc2_w.T
    b2 = np.zeros((1, lanes), np.float32)
    b2[0, :n_out] = fc2_b

    # Matmul operands in the compute dtype; biases stay f32 (added to f32 acc).
    return (jnp.asarray(wc, dtype), jnp.asarray(bc, jnp.float32),
            jnp.asarray(w1, dtype), jnp.asarray(b1, jnp.float32),
            jnp.asarray(w2, dtype), jnp.asarray(b2, jnp.float32))


def _round_up(n, m):
    return ((n + m - 1) // m) * m


# -----------------------------------------------------------------------------
# Forward pass wrapper
# -----------------------------------------------------------------------------
def convnet_forward(x, packed, *, num_outputs=10, block_n=1024,
                    single_block_max=512, out_dtype=jnp.float32):
    wc, bc, w1, b1, w2, b2 = packed
    N = x.shape[0]
    d_in = wc.shape[0]                             # 784
    d_out = w2.shape[1]                            # 128 (padded lanes)

    xf = x.reshape(N, d_in)
    if xf.dtype != wc.dtype:
        # Extra HBM pass — producers should hand the batch over already in the
        # compute dtype (as the bf16 demo path below does) so this is dead code.
        xf = xf.astype(wc.dtype)

    if N <= single_block_max:
        tb = N                                     # single block (full dims: legal)
    else:
        # >= 4 grid steps so the "parallel" axis feeds both v7x TensorCores and
        # DMA/compute pipeline; tb multiple of 8 -> only the tail block is partial.
        tb = min(block_n, _round_up(pl.cdiv(N, 4), 8))
    grid_n = pl.cdiv(N, tb)                        # uneven tail handled by masking

    out = pl.pallas_call(
        convnet_kernel,
        out_shape=jax.ShapeDtypeStruct((N, d_out), out_dtype),
        grid=(grid_n,),
        in_specs=[
            pl.BlockSpec((tb, d_in), lambda i: (i, 0)),
            pl.BlockSpec(wc.shape, lambda i: (0, 0)),   # weights: resident in VMEM
            pl.BlockSpec(bc.shape, lambda i: (0, 0)),
            pl.BlockSpec(w1.shape, lambda i: (0, 0)),
            pl.BlockSpec(b1.shape, lambda i: (0, 0)),
            pl.BlockSpec(w2.shape, lambda i: (0, 0)),
            pl.BlockSpec(b2.shape, lambda i: (0, 0)),
        ],
        out_specs=pl.BlockSpec((tb, d_out), lambda i: (i, 0)),
        compiler_params=pltpu.CompilerParams(
            dimension_semantics=("parallel",),
            vmem_limit_bytes=32 * 1024 * 1024),
    )(xf, wc, bc, w1, b1, w2, b2)

    return out[:, :num_outputs]


# -----------------------------------------------------------------------------
# Reference (pure JAX, f32) for sanity checking
# -----------------------------------------------------------------------------
def convnet_reference(x, params):
    conv_w, conv_b, fc1_w, fc1_b, fc2_w, fc2_b = params
    N = x.shape[0]
    y = jax.lax.conv_general_dilated(
        x, conv_w, window_strides=(3, 3), padding="VALID",
        dimension_numbers=("NCHW", "OIHW", "NCHW"))
    y = y + conv_b.reshape(1, -1, 1, 1)
    y = y * y
    y = y.reshape(N, 256)
    h = y @ fc1_w.T + fc1_b
    h = h * h
    return h @ fc2_w.T + fc2_b


if __name__ == "__main__":
    key = jax.random.PRNGKey(0)
    k_x, k_cw, k_cb, k_w1, k_b1, k_w2, k_b2, k_x2 = jax.random.split(key, 8)

    # Input spatial size 28x28 is forced by fc1(256): ((28-7)//3+1)**2 * 4 = 256.
    N = 2
    x = jax.random.normal(k_x, (N, 1, 28, 28), dtype=jnp.float32)

    conv_w = 0.1 * jax.random.normal(k_cw, (4, 1, 7, 7), dtype=jnp.float32)
    conv_b = 0.1 * jax.random.normal(k_cb, (4,), dtype=jnp.float32)
    fc1_w = 0.05 * jax.random.normal(k_w1, (64, 256), dtype=jnp.float32)
    fc1_b = 0.05 * jax.random.normal(k_b1, (64,), dtype=jnp.float32)
    fc2_w = 0.05 * jax.random.normal(k_w2, (10, 64), dtype=jnp.float32)
    fc2_b = 0.05 * jax.random.normal(k_b2, (10,), dtype=jnp.float32)
    params = (conv_w, conv_b, fc1_w, fc1_b, fc2_w, fc2_b)

    ref = convnet_reference(x, params)
    fwd = jax.jit(convnet_forward)

    # Default bf16 path: pixels handed over already in bf16 (no pre-kernel cast
    # pass), bf16 MXU operands, f32 accumulation / squares.
    packed_bf16 = pack_params(params)                       # dtype=bf16 default
    out_bf = jax.block_until_ready(fwd(x.astype(jnp.bfloat16), packed_bf16))
    assert out_bf.shape == (N, 10), out_bf.shape
    assert jnp.allclose(out_bf, ref, atol=1e-1, rtol=1e-1), \
        float(jnp.max(jnp.abs(out_bf - ref)))

    # f32 path: exact parity with the PyTorch module's float32 semantics.
    packed_f32 = pack_params(params, dtype=jnp.float32)
    out_f32 = jax.block_until_ready(fwd(x, packed_f32))
    assert jnp.allclose(out_f32, ref, atol=1e-3, rtol=1e-3), \
        float(jnp.max(jnp.abs(out_f32 - ref)))

    # Multi-block path with an uneven tail (no jnp.pad: cdiv grid + masking).
    N2 = 13
    x2 = jax.random.normal(k_x2, (N2, 1, 28, 28), dtype=jnp.float32)
    ref2 = convnet_reference(x2, params)
    fwd_tiled = jax.jit(
        lambda xx, pp: convnet_forward(xx, pp, block_n=8, single_block_max=8))
    out2 = jax.block_until_ready(fwd_tiled(x2.astype(jnp.bfloat16), packed_bf16))
    assert out2.shape == (N2, 10), out2.shape
    assert jnp.allclose(out2, ref2, atol=1e-1, rtol=1e-1), \
        float(jnp.max(jnp.abs(out2 - ref2)))

    print("KERNEL_OK")
</pallas_src>

<mosaic_0001>
module attributes {stable_mosaic.version = 11 : i64} {
  func.func @convnet_kernel(%arg0: i32, %arg1: memref<2x784xbf16, #tpu.memory_space<vmem>>, %arg2: memref<784x256xbf16, #tpu.memory_space<vmem>>, %arg3: memref<1x256xf32, #tpu.memory_space<vmem>>, %arg4: memref<256x128xbf16, #tpu.memory_space<vmem>>, %arg5: memref<1x128xf32, #tpu.memory_space<vmem>>, %arg6: memref<128x128xbf16, #tpu.memory_space<vmem>>, %arg7: memref<1x128xf32, #tpu.memory_space<vmem>>, %arg8: memref<2x128xf32, #tpu.memory_space<vmem>>) attributes {dimension_semantics = [#tpu.dimension_semantics<parallel>], iteration_bounds = array<i64: 1>, scalar_prefetch = 0 : i64, scratch_operands = 0 : i64, tpu.core_type = #tpu.core_type<tc>, window_params = [{transform_indices = @transform_0, window_bounds = array<i64: 2, 784>}, {pipeline_mode = #tpu.pipeline_mode<synchronous>, transform_indices = @transform_1, window_bounds = array<i64: 784, 256>}, {pipeline_mode = #tpu.pipeline_mode<synchronous>, transform_indices = @transform_2, window_bounds = array<i64: 1, 256>}, {pipeline_mode = #tpu.pipeline_mode<synchronous>, transform_indices = @transform_3, window_bounds = array<i64: 256, 128>}, {pipeline_mode = #tpu.pipeline_mode<synchronous>, transform_indices = @transform_4, window_bounds = array<i64: 1, 128>}, {pipeline_mode = #tpu.pipeline_mode<synchronous>, transform_indices = @transform_5, window_bounds = array<i64: 128, 128>}, {pipeline_mode = #tpu.pipeline_mode<synchronous>, transform_indices = @transform_6, window_bounds = array<i64: 1, 128>}, {transform_indices = @transform_7, window_bounds = array<i64: 2, 128>}]} {
    %c0 = arith.constant 0 : index
    %c0_0 = arith.constant 0 : index
    %0 = vector.load %arg1[%c0, %c0_0] : memref<2x784xbf16, #tpu.memory_space<vmem>>, vector<2x784xbf16>
    %c0_1 = arith.constant 0 : index
    %c0_2 = arith.constant 0 : index
    %1 = vector.load %arg2[%c0_1, %c0_2] : memref<784x256xbf16, #tpu.memory_space<vmem>>, vector<784x256xbf16>
    %cst = arith.constant dense<0.000000e+00> : vector<2x256xf32>
    %2 = tpu.matmul %0, %1, %cst {dimension_numbers = #tpu.dot_dimension_numbers<[1], [0], [0], [1], [0, 0, 1, 1], [], []>} : vector<2x784xbf16>, vector<784x256xbf16>, vector<2x256xf32> -> vector<2x256xf32>
    %c0_3 = arith.constant 0 : index
    %c0_4 = arith.constant 0 : index
    %3 = vector.load %arg3[%c0_3, %c0_4] : memref<1x256xf32, #tpu.memory_space<vmem>>, vector<1x256xf32>
    %4 = vector.broadcast %3 : vector<1x256xf32> to vector<2x256xf32>
    %5 = arith.addf %2, %4 : vector<2x256xf32>
    %6 = arith.mulf %5, %5 : vector<2x256xf32>
    %7 = arith.truncf %6 : vector<2x256xf32> to vector<2x256xbf16>
    %c0_5 = arith.constant 0 : index
    %c0_6 = arith.constant 0 : index
    %8 = vector.load %arg4[%c0_5, %c0_6] : memref<256x128xbf16, #tpu.memory_space<vmem>>, vector<256x128xbf16>
    %cst_7 = arith.constant dense<0.000000e+00> : vector<2x128xf32>
    %9 = tpu.matmul %7, %8, %cst_7 {dimension_numbers = #tpu.dot_dimension_numbers<[1], [0], [0], [1], [0, 0, 1, 1], [], []>} : vector<2x256xbf16>, vector<256x128xbf16>, vector<2x128xf32> -> vector<2x128xf32>
    %c0_8 = arith.constant 0 : index
    %c0_9 = arith.constant 0 : index
    %10 = vector.load %arg5[%c0_8, %c0_9] : memref<1x128xf32, #tpu.memory_space<vmem>>, vector<1x128xf32>
    %11 = vector.broadcast %10 : vector<1x128xf32> to vector<2x128xf32>
    %12 = arith.addf %9, %11 : vector<2x128xf32>
    %13 = arith.mulf %12, %12 : vector<2x128xf32>
    %14 = arith.truncf %13 : vector<2x128xf32> to vector<2x128xbf16>
    %c0_10 = arith.constant 0 : index
    %c0_11 = arith.constant 0 : index
    %15 = vector.load %arg6[%c0_10, %c0_11] : memref<128x128xbf16, #tpu.memory_space<vmem>>, vector<128x128xbf16>
    %cst_12 = arith.constant dense<0.000000e+00> : vector<2x128xf32>
    %16 = tpu.matmul %14, %15, %cst_12 {dimension_numbers = #tpu.dot_dimension_numbers<[1], [0], [0], [1], [0, 0, 1, 1], [], []>} : vector<2x128xbf16>, vector<128x128xbf16>, vector<2x128xf32> -> vector<2x128xf32>
    %c0_13 = arith.constant 0 : index
    %c0_14 = arith.constant 0 : index
    %17 = vector.load %arg7[%c0_13, %c0_14] : memref<1x128xf32, #tpu.memory_space<vmem>>, vector<1x128xf32>
    %18 = vector.broadcast %17 : vector<1x128xf32> to vector<2x128xf32>
    %19 = arith.addf %16, %18 : vector<2x128xf32>
    %c0_15 = arith.constant 0 : index
    %c0_16 = arith.constant 0 : index
    %20 = vector.load %arg8[%c0_15, %c0_16] : memref<2x128xf32, #tpu.memory_space<vmem>>, vector<2x128xf32>
    tpu.vector_store %arg8[%c0_15, %c0_16], %19 {strides = array<i32>} : memref<2x128xf32, #tpu.memory_space<vmem>>, vector<2x128xf32>,
    return
  }
  func.func @transform_0(%arg0: i32) -> (i32, i32) {
    %c0_i32 = arith.constant 0 : i32
    %c0_i32_0 = arith.constant 0 : i32
    return %arg0, %c0_i32 : i32, i32
  }
  func.func @transform_1(%arg0: i32) -> (i32, i32) {
    %c0_i32 = arith.constant 0 : i32
    %c0_i32_0 = arith.constant 0 : i32
    %c0_i32_1 = arith.constant 0 : i32
    return %c0_i32, %c0_i32_0 : i32, i32
  }
  func.func @transform_2(%arg0: i32) -> (i32, i32) {
    %c0_i32 = arith.constant 0 : i32
    %c0_i32_0 = arith.constant 0 : i32
    %c0_i32_1 = arith.constant 0 : i32
    return %c0_i32, %c0_i32_0 : i32, i32
  }
  func.func @transform_3(%arg0: i32) -> (i32, i32) {
    %c0_i32 = arith.constant 0 : i32
    %c0_i32_0 = arith.constant 0 : i32
    %c0_i32_1 = arith.constant 0 : i32
    return %c0_i32, %c0_i32_0 : i32, i32
  }
  func.func @transform_4(%arg0: i32) -> (i32, i32) {
    %c0_i32 = arith.constant 0 : i32
    %c0_i32_0 = arith.constant 0 : i32
    %c0_i32_1 = arith.constant 0 : i32
    return %c0_i32, %c0_i32_0 : i32, i32
  }
  func.func @transform_5(%arg0: i32) -> (i32, i32) {
    %c0_i32 = arith.constant 0 : i32
    %c0_i32_0 = arith.constant 0 : i32
    %c0_i32_1 = arith.constant 0 : i32
    return %c0_i32, %c0_i32_0 : i32, i32
  }
  func.func @transform_6(%arg0: i32) -> (i32, i32) {
    %c0_i32 = arith.constant 0 : i32
    %c0_i32_0 = arith.constant 0 : i32
    %c0_i32_1 = arith.constant 0 : i32
    return %c0_i32, %c0_i32_0 : i32, i32
  }
  func.func @transform_7(%arg0: i32) -> (i32, i32) {
    %c0_i32 = arith.constant 0 : i32
    %c0_i32_0 = arith.constant 0 : i32
    return %arg0, %c0_i32 : i32, i32
  }
}

</mosaic_0001>

<llo_original>
// kernel: convnet_forward.1
$region0: #{convnet_forward.1}
  #allocation0 [shape = 'u32[]', space=smem, size = 0x4, offset = 0x4, fixed_abs, tag = 'smem constant byte address 0x4 - core index']
  #allocation1 [shape = 'u32[72,128]{1,0:T(1,128)}', space=vmem, size = 0x9000, scoped, tag = 'internal scratch']
  %s0 = inlined_call_operand.vmem [shape: bf16[2,784], index: 0, kind: input, shape index: {}]
  %s1 = inlined_call_operand.hbm [shape: bf16[784,256], index: 1, kind: input, shape index: {}]
  %s2 = inlined_call_operand.vmem [shape: f32[1,256], index: 2, kind: input, shape index: {}]
  %s3 = inlined_call_operand.hbm [shape: bf16[256,128], index: 3, kind: input, shape index: {}]
  %s4 = inlined_call_operand.vmem [shape: f32[1,128], index: 4, kind: input, shape index: {}]
  %s5 = inlined_call_operand.vmem [shape: bf16[128,128], index: 5, kind: input, shape index: {}]
  %s6 = inlined_call_operand.vmem [shape: f32[1,128], index: 6, kind: input, shape index: {}]
  %s7 = inlined_call_operand.hbm [shape: f32[2,128], index: 7, kind: output, shape index: {}]
  %s8 = sld [smem:[#allocation0]]
  $region46: #{convnet_forward.1} parent=0
    _
  %s10 = ssub.s32 1, %s8
  %s11 = scalar_select 0, %s10, %s8
  $region1: #{convnet_forward.1} parent=0
    #allocation2 [shape = 'u8[401408]{0}', space=vmem, size = 0x62000, scoped, tag = 'input window, operand 1, single buffered']
    #allocation3 [shape = 's32[1]{0}', space=sflag, size = 0x4, scoped, tag = 'scoped memory for convnet_forward.1']
    #allocation4 [shape = 's32[1]{0}', space=sflag, size = 0x4, scoped, tag = 'scoped memory for convnet_forward.1']
    #allocation5 [shape = 'u8[65536]{0}', space=vmem, size = 0x10000, scoped, tag = 'input window, operand 3, single buffered']
    #allocation6 [shape = 's32[1]{0}', space=sflag, size = 0x4, scoped, tag = 'scoped memory for convnet_forward.1']
    #allocation7 [shape = 'u8[1024]{0}', space=vmem, size = 0x400, scoped, tag = 'output window, operand 0, single buffered']
    %12 = vsyncpa [#allocation3], 0
    %13 = vsyncpa [#allocation6], 0
    %14 = vsyncpa [#allocation4], 0
    // Predicated region
    $region2: #{convnet_forward.1} parent=1 // pred_check
      _
    $region3: #{convnet_forward.1} parent=1 // pred_check_branch
      %16 = sbr.rel (0) target = $region5
    $region4: #{convnet_forward.1} parent=1 // pred_region
      _
    $region5: #{convnet_forward.1} parent=1 // pred_fallthru
      _
    // Predicated region
    $region6: #{convnet_forward.1} parent=1 // pred_check
      _
    $region7: #{convnet_forward.1} parent=1 // pred_check_branch
      %18 = sbr.rel (0) target = $region9
    $region8: #{convnet_forward.1} parent=1 // pred_region
      %20 = vsyncadd [#allocation3], 0
      %s21 = sshll.u32 %s1, 4
      %s22 = int_to_ptr.hbm [resolvable:$true] %s21
      %s23 = sshll.u32 [#allocation2], 4
      %s24 = int_to_ptr.vmem [resolvable:$true] %s23
      %29 = dma.hbm_to_vmem [thread:$0]  %s22, 12544, %s24, [#allocation3], 128, 128, 8
    $region9: #{convnet_forward.1} parent=1 // pred_fallthru
      _
    // Predicated region
    $region10: #{convnet_forward.1} parent=1 // pred_check
      _
    $region11: #{convnet_forward.1} parent=1 // pred_check_branch
      %31 = sbr.rel (0) target = $region13
    $region12: #{convnet_forward.1} parent=1 // pred_region
      _
    $region13: #{convnet_forward.1} parent=1 // pred_fallthru
      _
    // Predicated region
    $region14: #{convnet_forward.1} parent=1 // pred_check
      _
    $region15: #{convnet_forward.1} parent=1 // pred_check_branch
      %33 = sbr.rel (0) target = $region17
    $region16: #{convnet_forward.1} parent=1 // pred_region
      %35 = vsyncadd [#allocation6], 0
      %s36 = sshll.u32 %s3, 4
      %s37 = int_to_ptr.hbm [resolvable:$true] %s36
      %s38 = sshll.u32 [#allocation5], 4
      %s39 = int_to_ptr.vmem [resolvable:$true] %s38
      %44 = dma.hbm_to_vmem [thread:$0]  %s37, 2048, %s39, [#allocation6], 64, 64, 4
    $region17: #{convnet_forward.1} parent=1 // pred_fallthru
      _
    // Predicated region
    $region18: #{convnet_forward.1} parent=1 // pred_check
      _
    $region19: #{convnet_forward.1} parent=1 // pred_check_branch
      %46 = sbr.rel (0) target = $region21
    $region20: #{convnet_forward.1} parent=1 // pred_region
      _
    $region21: #{convnet_forward.1} parent=1 // pred_fallthru
      _
    // Predicated region
    $region22: #{convnet_forward.1} parent=1 // pred_check
      _
    $region23: #{convnet_forward.1} parent=1 // pred_check_branch
      %48 = sbr.rel (0) target = $region25
    $region24: #{convnet_forward.1} parent=1 // pred_region
      _
    $region25: #{convnet_forward.1} parent=1 // pred_fallthru
      _
    // Predicated region
    $region26: #{convnet_forward.1} parent=1 // pred_check
      _
    $region27: #{convnet_forward.1} parent=1 // pred_check_branch
      %50 = sbr.rel (0) target = $region29
    $region28: #{convnet_forward.1} parent=1 // pred_region
      _
    $region29: #{convnet_forward.1} parent=1 // pred_fallthru
      _
    // Predicated region
    $region30: #{convnet_forward.1} parent=1 // pred_check
      _
    $region31: #{convnet_forward.1} parent=1 // pred_check_branch
      %52 = sbr.rel (0) target = $region33
    $region32: #{convnet_forward.1} parent=1 // pred_region
      %54 = dma.done [#allocation3], 12544
    $region33: #{convnet_forward.1} parent=1 // pred_fallthru
      _
    // Predicated region
    $region34: #{convnet_forward.1} parent=1 // pred_check
      _
    $region35: #{convnet_forward.1} parent=1 // pred_check_branch
      %56 = sbr.rel (0) target = $region37
    $region36: #{convnet_forward.1} parent=1 // pred_region
      %58 = dma.done [#allocation6], 2048
    $region37: #{convnet_forward.1} parent=1 // pred_fallthru
      _
    %v60 = vld [vmem:[%s0] sm:$0x7f]
    %v61 = vld [vmem:[#allocation2] sm:$0xff]
    %v62 = vld [vmem:[#allocation2 + $0x8] sm:$0xff]
    %v63 = vld [vmem:[#allocation2 + $0x10] sm:$0xff]
    %v64 = vld [vmem:[#allocation2 + $0x18] sm:$0xff]
    %v65 = vld [vmem:[#allocation2 + $0x20] sm:$0xff]
    %v66 = vld [vmem:[#allocation2 + $0x28] sm:$0xff]
    %v67 = vld [vmem:[#allocation2 + $0x30] sm:$0xff]
    %v68 = vld [vmem:[#allocation2 + $0x38] sm:$0xff]
    %v69 = vld [vmem:[#allocation2 + $0x40] sm:$0xff]
    %v70 = vld [vmem:[#allocation2 + $0x48] sm:$0xff]
    %v71 = vld [vmem:[#allocation2 + $0x50] sm:$0xff]
    %v72 = vld [vmem:[#allocation2 + $0x58] sm:$0xff]
    %v73 = vld [vmem:[#allocation2 + $0x60] sm:$0xff]
    %v74 = vld [vmem:[#allocation2 + $0x68] sm:$0xff]
    %v75 = vld [vmem:[#allocation2 + $0x70] sm:$0xff]
    %v76 = vld [vmem:[#allocation2 + $0x78] sm:$0xff]
    %v77 = vld [vmem:[#allocation2 + $0x80] sm:$0xff]
    %v78 = vld [vmem:[#allocation2 + $0x88] sm:$0xff]
    %v79 = vld [vmem:[#allocation2 + $0x90] sm:$0xff]
    %v80 = vld [vmem:[#allocation2 + $0x98] sm:$0xff]
    %v81 = vld [vmem:[#allocation2 + $0xa0] sm:$0xff]
    %v82 = vld [vmem:[#allocation2 + $0xa8] sm:$0xff]
    %v83 = vld [vmem:[#allocation2 + $0xb0] sm:$0xff]
    %v84 = vld [vmem:[#allocation2 + $0xb8] sm:$0xff]
    %v85 = vld [vmem:[#allocation2 + $0xc0] sm:$0xff]
    %v86 = vld [vmem:[#allocation2 + $0xc8] sm:$0xff]
    %v87 = vld [vmem:[#allocation2 + $0xd0] sm:$0xff]
    %v88 = vld [vmem:[#allocation2 + $0xd8] sm:$0xff]
    %v89 = vld [vmem:[#allocation2 + $0xe0] sm:$0xff]
    %v90 = vld [vmem:[#allocation2 + $0xe8] sm:$0xff]
    %v91 = vld [vmem:[#allocation2 + $0xf0] sm:$0xff]
    %v92 = vld [vmem:[#allocation2 + $0xf8] sm:$0xff]
    %v93 = vld [vmem:[#allocation2 + $0x100] sm:$0xff]
    %v94 = vld [vmem:[#allocation2 + $0x108] sm:$0xff]
    %v95 = vld [vmem:[#allocation2 + $0x110] sm:$0xff]
    %v96 = vld [vmem:[#allocation2 + $0x118] sm:$0xff]
    %v97 = vld [vmem:[#allocation2 + $0x120] sm:$0xff]
    %v98 = vld [vmem:[#allocation2 + $0x128] sm:$0xff]
    %v99 = vld [vmem:[#allocation2 + $0x130] sm:$0xff]
    %v100 = vld [vmem:[#allocation2 + $0x138] sm:$0xff]
    %v101 = vld [vmem:[#allocation2 + $0x140] sm:$0xff]
    %v102 = vld [vmem:[#allocation2 + $0x148] sm:$0xff]
    %v103 = vld [vmem:[#allocation2 + $0x150] sm:$0xff]
    %v104 = vld [vmem:[#allocation2 + $0x158] sm:$0xff]
    %v105 = vld [vmem:[#allocation2 + $0x160] sm:$0xff]
    %v106 = vld [vmem:[#allocation2 + $0x168] sm:$0xff]
    %v107 = vld [vmem:[#allocation2 + $0x170] sm:$0xff]
    %v108 = vld [vmem:[#allocation2 + $0x178] sm:$0xff]
    %v109 = vld [vmem:[#allocation2 + $0x180] sm:$0xff]
    %v110 = vld [vmem:[#allocation2 + $0x188] sm:$0xff]
    %v111 = vld [vmem:[#allocation2 + $0x190] sm:$0xff]
    %v112 = vld [vmem:[#allocation2 + $0x198] sm:$0xff]
    %v113 = vld [vmem:[#allocation2 + $0x1a0] sm:$0xff]
    %v114 = vld [vmem:[#allocation2 + $0x1a8] sm:$0xff]
    %v115 = vld [vmem:[#allocation2 + $0x1b0] sm:$0xff]
    %v116 = vld [vmem:[#allocation2 + $0x1b8] sm:$0xff]
    %v117 = vld [vmem:[#allocation2 + $0x1c0] sm:$0xff]
    %v118 = vld [vmem:[#allocation2 + $0x1c8] sm:$0xff]
    %v119 = vld [vmem:[#allocation2 + $0x1d0] sm:$0xff]
    %v120 = vld [vmem:[#allocation2 + $0x1d8] sm:$0xff]
    %v121 = vld [vmem:[#allocation2 + $0x1e0] sm:$0xff]
    %v122 = vld [vmem:[#allocation2 + $0x1e8] sm:$0xff]
    %v123 = vld [vmem:[#allocation2 + $0x1f0] sm:$0xff]
    %v124 = vld [vmem:[#allocation2 + $0x1f8] sm:$0xff]
    %v125 = vld [vmem:[#allocation2 + $0x200] sm:$0xff]
    %v126 = vld [vmem:[#allocation2 + $0x208] sm:$0xff]
    %v127 = vld [vmem:[#allocation2 + $0x210] sm:$0xff]
    %v128 = vld [vmem:[#allocation2 + $0x218] sm:$0xff]
    %v129 = vld [vmem:[#allocation2 + $0x220] sm:$0xff]
    %v130 = vld [vmem:[#allocation2 + $0x228] sm:$0xff]
    %v131 = vld [vmem:[#allocation2 + $0x230] sm:$0xff]
    %v132 = vld [vmem:[#allocation2 + $0x238] sm:$0xff]
    %v133 = vld [vmem:[#allocation2 + $0x240] sm:$0xff]
    %v134 = vld [vmem:[#allocation2 + $0x248] sm:$0xff]
    %v135 = vld [vmem:[#allocation2 + $0x250] sm:$0xff]
    %v136 = vld [vmem:[#allocation2 + $0x258] sm:$0xff]
    %v137 = vld [vmem:[#allocation2 + $0x260] sm:$0xff]
    %v138 = vld [vmem:[#allocation2 + $0x268] sm:$0xff]
    %v139 = vld [vmem:[#allocation2 + $0x270] sm:$0xff]
    %v140 = vld [vmem:[#allocation2 + $0x278] sm:$0xff]
    %v141 = vld [vmem:[#allocation2 + $0x280] sm:$0xff]
    %v142 = vld [vmem:[#allocation2 + $0x288] sm:$0xff]
    %v143 = vld [vmem:[#allocation2 + $0x290] sm:$0xff]
    %v144 = vld [vmem:[#allocation2 + $0x298] sm:$0xff]
    %v145 = vld [vmem:[#allocation2 + $0x2a0] sm:$0xff]
    %v146 = vld [vmem:[#allocation2 + $0x2a8] sm:$0xff]
    %v147 = vld [vmem:[#allocation2 + $0x2b0] sm:$0xff]
    %v148 = vld [vmem:[#allocation2 + $0x2b8] sm:$0xff]
    %v149 = vld [vmem:[#allocation2 + $0x2c0] sm:$0xff]
    %v150 = vld [vmem:[#allocation2 + $0x2c8] sm:$0xff]
    %v151 = vld [vmem:[#allocation2 + $0x2d0] sm:$0xff]
    %v152 = vld [vmem:[#allocation2 + $0x2d8] sm:$0xff]
    %v153 = vld [vmem:[#allocation2 + $0x2e0] sm:$0xff]
    %v154 = vld [vmem:[#allocation2 + $0x2e8] sm:$0xff]
    %v155 = vld [vmem:[#allocation2 + $0x2f0] sm:$0xff]
    %v156 = vld [vmem:[#allocation2 + $0x2f8] sm:$0xff]
    %v157 = vld [vmem:[#allocation2 + $0x300] sm:$0xff]
    %v158 = vld [vmem:[#allocation2 + $0x308] sm:$0xff]
    %v159 = vld [vmem:[%s2] sm:$0x3]
    %v161 = vperm.slane %v159, 0
    %v162 = vperm.slane %v159, 1
    %166 = vst [vmem:[#allocation1] ss:$9 sm:$0xff] %v60
    %v167 = vld [vmem:[#allocation1] sm:$0xff]
    %v168 = vld [vmem:[#allocation1 + $0x9] sm:$0xff]
    %v169 = vld [vmem:[#allocation1 + $0x12] sm:$0xff]
    %v170 = vld [vmem:[#allocation1 + $0x1b] sm:$0xff]
    %v171 = vld [vmem:[#allocation1 + $0x24] sm:$0xff]
    %v172 = vld [vmem:[#allocation1 + $0x2d] sm:$0xff]
    %v173 = vld [vmem:[#allocation1 + $0x36] sm:$0xff]
    %v278 = vunpack.c.l.b16 %v61
    %v279 = vunpack.c.h.b16 %v61
    %v280 = vunpack.c.l.b16 %v62
    %v281 = vunpack.c.h.b16 %v62
    %v282 = vunpack.c.l.b16 %v63
    %v283 = vunpack.c.h.b16 %v63
    %v284 = vunpack.c.l.b16 %v64
    %v285 = vunpack.c.h.b16 %v64
    %v286 = vunpack.c.l.b16 %v65
    %v287 = vunpack.c.h.b16 %v65
    %v288 = vunpack.c.l.b16 %v66
    %v289 = vunpack.c.h.b16 %v66
    %v290 = vunpack.c.l.b16 %v67
    %v291 = vunpack.c.h.b16 %v67
    %v292 = vunpack.c.l.b16 %v68
    %v293 = vunpack.c.h.b16 %v68
    %v294 = vunpack.c.l.b16 %v69
    %v295 = vunpack.c.h.b16 %v69
    %v296 = vunpack.c.l.b16 %v70
    %v297 = vunpack.c.h.b16 %v70
    %v298 = vunpack.c.l.b16 %v71
    %v299 = vunpack.c.h.b16 %v71
    %v300 = vunpack.c.l.b16 %v72
    %v301 = vunpack.c.h.b16 %v72
    %v302 = vunpack.c.l.b16 %v73
    %v303 = vunpack.c.h.b16 %v73
    %v304 = vunpack.c.l.b16 %v74
    %v305 = vunpack.c.h.b16 %v74
    %v306 = vunpack.c.l.b16 %v75
    %v307 = vunpack.c.h.b16 %v75
    %v308 = vunpack.c.l.b16 %v76
    %v309 = vunpack.c.h.b16 %v76
    %v310 = vunpack.c.l.b16 %v77
    %v311 = vunpack.c.h.b16 %v77
    %v312 = vunpack.c.l.b16 %v78
    %v313 = vunpack.c.h.b16 %v78
    %v314 = vunpack.c.l.b16 %v79
    %v315 = vunpack.c.h.b16 %v79
    %v316 = vunpack.c.l.b16 %v80
    %v317 = vunpack.c.h.b16 %v80
    %v318 = vunpack.c.l.b16 %v81
    %v319 = vunpack.c.h.b16 %v81
    %v320 = vunpack.c.l.b16 %v82
    %v321 = vunpack.c.h.b16 %v82
    %v322 = vunpack.c.l.b16 %v83
    %v323 = vunpack.c.h.b16 %v83
    %v324 = vunpack.c.l.b16 %v84
    %v325 = vunpack.c.h.b16 %v84
    %v326 = vunpack.c.l.b16 %v85
    %v327 = vunpack.c.h.b16 %v85
    %v328 = vunpack.c.l.b16 %v86
    %v329 = vunpack.c.h.b16 %v86
    %v330 = vunpack.c.l.b16 %v87
    %v331 = vunpack.c.h.b16 %v87
    %v332 = vunpack.c.l.b16 %v88
    %v333 = vunpack.c.h.b16 %v88
    %v334 = vunpack.c.l.b16 %v89
    %v335 = vunpack.c.h.b16 %v89
    %v336 = vunpack.c.l.b16 %v90
    %v337 = vunpack.c.h.b16 %v90
    %v338 = vunpack.c.l.b16 %v91
    %v339 = vunpack.c.h.b16 %v91
    %v340 = vunpack.c.l.b16 %v92
    %v341 = vunpack.c.h.b16 %v92
    %v342 = vunpack.c.l.b16 %v93
    %v343 = vunpack.c.h.b16 %v93
    %v344 = vunpack.c.l.b16 %v94
    %v345 = vunpack.c.h.b16 %v94
    %v346 = vunpack.c.l.b16 %v95
    %v347 = vunpack.c.h.b16 %v95
    %v348 = vunpack.c.l.b16 %v96
    %v349 = vunpack.c.h.b16 %v96
    %v350 = vunpack.c.l.b16 %v97
    %v351 = vunpack.c.h.b16 %v97
    %v352 = vunpack.c.l.b16 %v98
    %v353 = vunpack.c.h.b16 %v98
    %v354 = vunpack.c.l.b16 %v99
    %v355 = vunpack.c.h.b16 %v99
    %v356 = vunpack.c.l.b16 %v100
    %v357 = vunpack.c.h.b16 %v100
    %v358 = vunpack.c.l.b16 %v101
    %v359 = vunpack.c.h.b16 %v101
    %v360 = vunpack.c.l.b16 %v102
    %v361 = vunpack.c.h.b16 %v102
    %v362 = vunpack.c.l.b16 %v103
    %v363 = vunpack.c.h.b16 %v103
    %v364 = vunpack.c.l.b16 %v104
    %v365 = vunpack.c.h.b16 %v104
    %v366 = vunpack.c.l.b16 %v105
    %v367 = vunpack.c.h.b16 %v105
    %v368 = vunpack.c.l.b16 %v106
    %v369 = vunpack.c.h.b16 %v106
    %v370 = vunpack.c.l.b16 %v107
    %v371 = vunpack.c.h.b16 %v107
    %v372 = vunpack.c.l.b16 %v108
    %v373 = vunpack.c.h.b16 %v108
    %v374 = vunpack.c.l.b16 %v109
    %v375 = vunpack.c.h.b16 %v109
    %v376 = vunpack.c.l.b16 %v110
    %v377 = vunpack.c.h.b16 %v110
    %v378 = vunpack.c.l.b16 %v111
    %v379 = vunpack.c.h.b16 %v111
    %v380 = vunpack.c.l.b16 %v112
    %v381 = vunpack.c.h.b16 %v112
    %v382 = vunpack.c.l.b16 %v113
    %v383 = vunpack.c.h.b16 %v113
    %v384 = vunpack.c.l.b16 %v114
    %v385 = vunpack.c.h.b16 %v114
    %v386 = vunpack.c.l.b16 %v115
    %v387 = vunpack.c.h.b16 %v115
    %v388 = vunpack.c.l.b16 %v116
    %v389 = vunpack.c.h.b16 %v116
    %v390 = vunpack.c.l.b16 %v117
    %v391 = vunpack.c.h.b16 %v117
    %v392 = vunpack.c.l.b16 %v118
    %v393 = vunpack.c.h.b16 %v118
    %v394 = vunpack.c.l.b16 %v119
    %v395 = vunpack.c.h.b16 %v119
    %v396 = vunpack.c.l.b16 %v120
    %v397 = vunpack.c.h.b16 %v120
    %v398 = vunpack.c.l.b16 %v121
    %v399 = vunpack.c.h.b16 %v121
    %v400 = vunpack.c.l.b16 %v122
    %v401 = vunpack.c.h.b16 %v122
    %v402 = vunpack.c.l.b16 %v123
    %v403 = vunpack.c.h.b16 %v123
    %v404 = vunpack.c.l.b16 %v124
    %v405 = vunpack.c.h.b16 %v124
    %v406 = vunpack.c.l.b16 %v125
    %v407 = vunpack.c.h.b16 %v125
    %v408 = vunpack.c.l.b16 %v126
    %v409 = vunpack.c.h.b16 %v126
    %v410 = vunpack.c.l.b16 %v127
    %v411 = vunpack.c.h.b16 %v127
    %v412 = vunpack.c.l.b16 %v128
    %v413 = vunpack.c.h.b16 %v128
    %v414 = vunpack.c.l.b16 %v129
    %v415 = vunpack.c.h.b16 %v129
    %v416 = vunpack.c.l.b16 %v130
    %v417 = vunpack.c.h.b16 %v130
    %v418 = vunpack.c.l.b16 %v131
    %v419 = vunpack.c.h.b16 %v131
    %v420 = vunpack.c.l.b16 %v132
    %v421 = vunpack.c.h.b16 %v132
    %v422 = vunpack.c.l.b16 %v133
    %v423 = vunpack.c.h.b16 %v133
    %v424 = vunpack.c.l.b16 %v134
    %v425 = vunpack.c.h.b16 %v134
    %v426 = vunpack.c.l.b16 %v135
    %v427 = vunpack.c.h.b16 %v135
    %v428 = vunpack.c.l.b16 %v136
    %v429 = vunpack.c.h.b16 %v136
    %v430 = vunpack.c.l.b16 %v137
    %v431 = vunpack.c.h.b16 %v137
    %v432 = vunpack.c.l.b16 %v138
    %v433 = vunpack.c.h.b16 %v138
    %v434 = vunpack.c.l.b16 %v139
    %v435 = vunpack.c.h.b16 %v139
    %v436 = vunpack.c.l.b16 %v140
    %v437 = vunpack.c.h.b16 %v140
    %v438 = vunpack.c.l.b16 %v141
    %v439 = vunpack.c.h.b16 %v141
    %v440 = vunpack.c.l.b16 %v142
    %v441 = vunpack.c.h.b16 %v142
    %v442 = vunpack.c.l.b16 %v143
    %v443 = vunpack.c.h.b16 %v143
    %v444 = vunpack.c.l.b16 %v144
    %v445 = vunpack.c.h.b16 %v144
    %v446 = vunpack.c.l.b16 %v145
    %v447 = vunpack.c.h.b16 %v145
    %v448 = vunpack.c.l.b16 %v146
    %v449 = vunpack.c.h.b16 %v146
    %v450 = vunpack.c.l.b16 %v147
    %v451 = vunpack.c.h.b16 %v147
    %v452 = vunpack.c.l.b16 %v148
    %v453 = vunpack.c.h.b16 %v148
    %v454 = vunpack.c.l.b16 %v149
    %v455 = vunpack.c.h.b16 %v149
    %v456 = vunpack.c.l.b16 %v150
    %v457 = vunpack.c.h.b16 %v150
    %v458 = vunpack.c.l.b16 %v151
    %v459 = vunpack.c.h.b16 %v151
    %v460 = vunpack.c.l.b16 %v152
    %v461 = vunpack.c.h.b16 %v152
    %v462 = vunpack.c.l.b16 %v153
    %v463 = vunpack.c.h.b16 %v153
    %v464 = vunpack.c.l.b16 %v154
    %v465 = vunpack.c.h.b16 %v154
    %v466 = vunpack.c.l.b16 %v155
    %v467 = vunpack.c.h.b16 %v155
    %v468 = vunpack.c.l.b16 %v156
    %v469 = vunpack.c.h.b16 %v156
    %v470 = vunpack.c.l.b16 %v157
    %v471 = vunpack.c.h.b16 %v157
    %v472 = vunpack.c.l.b16 %v158
    %v473 = vunpack.c.h.b16 %v158
    %v474 = vpack.c.b16 %v280, %v278
    %v475 = vpack.c.b16 %v281, %v279
    %v476 = vpack.c.b16 %v284, %v282
    %v477 = vpack.c.b16 %v285, %v283
    %v478 = vpack.c.b16 %v288, %v286
    %v479 = vpack.c.b16 %v289, %v287
    %v480 = vpack.c.b16 %v292, %v290
    %v481 = vpack.c.b16 %v293, %v291
    %v482 = vpack.c.b16 %v296, %v294
    %v483 = vpack.c.b16 %v297, %v295
    %v484 = vpack.c.b16 %v300, %v298
    %v485 = vpack.c.b16 %v301, %v299
    %v486 = vpack.c.b16 %v304, %v302
    %v487 = vpack.c.b16 %v305, %v303
    %v488 = vpack.c.b16 %v308, %v306
    %v489 = vpack.c.b16 %v309, %v307
    %v490 = vpack.c.b16 %v312, %v310
    %v491 = vpack.c.b16 %v313, %v311
    %v492 = vpack.c.b16 %v316, %v314
    %v493 = vpack.c.b16 %v317, %v315
    %v494 = vpack.c.b16 %v320, %v318
    %v495 = vpack.c.b16 %v321, %v319
    %v496 = vpack.c.b16 %v324, %v322
    %v497 = vpack.c.b16 %v325, %v323
    %v498 = vpack.c.b16 %v328, %v326
    %v499 = vpack.c.b16 %v329, %v327
    %v500 = vpack.c.b16 %v332, %v330
    %v501 = vpack.c.b16 %v333, %v331
    %v502 = vpack.c.b16 %v336, %v334
    %v503 = vpack.c.b16 %v337, %v335
    %v504 = vpack.c.b16 %v340, %v338
    %v505 = vpack.c.b16 %v341, %v339
    %v506 = vpack.c.b16 %v344, %v342
    %v507 = vpack.c.b16 %v345, %v343
    %v508 = vpack.c.b16 %v348, %v346
    %v509 = vpack.c.b16 %v349, %v347
    %v510 = vpack.c.b16 %v352, %v350
    %v511 = vpack.c.b16 %v353, %v351
    %v512 = vpack.c.b16 %v356, %v354
    %v513 = vpack.c.b16 %v357, %v355
    %v514 = vpack.c.b16 %v360, %v358
    %v515 = vpack.c.b16 %v361, %v359
    %v516 = vpack.c.b16 %v364, %v362
    %v517 = vpack.c.b16 %v365, %v363
    %v518 = vpack.c.b16 %v368, %v366
    %v519 = vpack.c.b16 %v369, %v367
    %v520 = vpack.c.b16 %v372, %v370
    %v521 = vpack.c.b16 %v373, %v371
    %v522 = vpack.c.b16 %v376, %v374
    %v523 = vpack.c.b16 %v377, %v375
    %v524 = vpack.c.b16 %v380, %v378
    %v525 = vpack.c.b16 %v381, %v379
    %v526 = vpack.c.b16 %v384, %v382
    %v527 = vpack.c.b16 %v385, %v383
    %v528 = vpack.c.b16 %v388, %v386
    %v529 = vpack.c.b16 %v389, %v387
    %v530 = vpack.c.b16 %v392, %v390
    %v531 = vpack.c.b16 %v393, %v391
    %v532 = vpack.c.b16 %v396, %v394
    %v533 = vpack.c.b16 %v397, %v395
    %v534 = vpack.c.b16 %v400, %v398
    %v535 = vpack.c.b16 %v401, %v399
    %v536 = vpack.c.b16 %v404, %v402
    %v537 = vpack.c.b16 %v405, %v403
    %v538 = vpack.c.b16 %v408, %v406
    %v539 = vpack.c.b16 %v409, %v407
    %v540 = vpack.c.b16 %v412, %v410
    %v541 = vpack.c.b16 %v413, %v411
    %v542 = vpack.c.b16 %v416, %v414
    %v543 = vpack.c.b16 %v417, %v415
    %v544 = vpack.c.b16 %v420, %v418
    %v545 = vpack.c.b16 %v421, %v419
    %v546 = vpack.c.b16 %v424, %v422
    %v547 = vpack.c.b16 %v425, %v423
    %v548 = vpack.c.b16 %v428, %v426
    %v549 = vpack.c.b16 %v429, %v427
    %v550 = vpack.c.b16 %v432, %v430
    %v551 = vpack.c.b16 %v433, %v431
    %v552 = vpack.c.b16 %v436, %v434
    %v553 = vpack.c.b16 %v437, %v435
    %v554 = vpack.c.b16 %v440, %v438
    %v555 = vpack.c.b16 %v441, %v439
    %v556 = vpack.c.b16 %v444, %v442
    %v557 = vpack.c.b16 %v445, %v443
    %v558 = vpack.c.b16 %v448, %v446
    %v559 = vpack.c.b16 %v449, %v447
    %v560 = vpack.c.b16 %v452, %v450
    %v561 = vpack.c.b16 %v453, %v451
    %v562 = vpack.c.b16 %v456, %v454
    %v563 = vpack.c.b16 %v457, %v455
    %v564 = vpack.c.b16 %v460, %v458
    %v565 = vpack.c.b16 %v461, %v459
    %v566 = vpack.c.b16 %v464, %v462
    %v567 = vpack.c.b16 %v465, %v463
    %v568 = vpack.c.b16 %v468, %v466
    %v569 = vpack.c.b16 %v469, %v467
    %v570 = vpack.c.b16 %v472, %v470
    %v571 = vpack.c.b16 %v473, %v471
    %vm670 = vcmask 130048
    %v671 = vsel %vm670, %v173, 0
    %673 = vmatpush.bf16.msra.mxu0 %v488
    %674 = vmatpush.bf16.msra.mxu0 %v486
    %675 = vmatpush.bf16.msra.mxu0 %v484
    %676 = vmatpush.bf16.msra.mxu0 %v482
    %677 = vmatpush.bf16.msra.mxu0 %v480
    %678 = vmatpush.bf16.msra.mxu0 %v478
    %679 = vmatpush.bf16.msra.mxu0 %v476
    %680 = vmatpush.bf16.msra.mxu0 %v474
    %681 = vmatmul.bf16.gmra.mxu0 %v167
    %v682 = vpop.f32.mrf.mxu0
    %v683 = vadd.f32 %v161, %v682
    %v684 = vpop.f32.mrf.mxu0
    %685 = vdwg.mxu0
    %686 = vmatpush.bf16.msra.mxu0 %v504
    %687 = vmatpush.bf16.msra.mxu0 %v502
    %688 = vmatpush.bf16.msra.mxu0 %v500
    %689 = vmatpush.bf16.msra.mxu0 %v498
    %690 = vmatpush.bf16.msra.mxu0 %v496
    %691 = vmatpush.bf16.msra.mxu0 %v494
    %692 = vmatpush.bf16.msra.mxu0 %v492
    %693 = vmatpush.bf16.msra.mxu0 %v490
    %694 = vmatmul.bf16.gmra.mxu0 %v168
    %v695 = vpop.f32.mrf.mxu0
    %v696 = vadd.f32 %v683, %v695
    %v697 = vpop.f32.mrf.mxu0
    %698 = vdwg.mxu0
    %699 = vmatpush.bf16.msra.mxu0 %v520
    %700 = vmatpush.bf16.msra.mxu0 %v518
    %701 = vmatpush.bf16.msra.mxu0 %v516
    %702 = vmatpush.bf16.msra.mxu0 %v514
    %703 = vmatpush.bf16.msra.mxu0 %v512
    %704 = vmatpush.bf16.msra.mxu0 %v510
    %705 = vmatpush.bf16.msra.mxu0 %v508
    %706 = vmatpush.bf16.msra.mxu0 %v506
    %707 = vmatmul.bf16.gmra.mxu0 %v169
    %v708 = vpop.f32.mrf.mxu0
    %v709 = vadd.f32 %v696, %v708
    %v710 = vpop.f32.mrf.mxu0
    %711 = vdwg.mxu0
    %712 = vmatpush.bf16.msra.mxu0 %v536
    %713 = vmatpush.bf16.msra.mxu0 %v534
    %714 = vmatpush.bf16.msra.mxu0 %v532
    %715 = vmatpush.bf16.msra.mxu0 %v530
    %716 = vmatpush.bf16.msra.mxu0 %v528
    %717 = vmatpush.bf16.msra.mxu0 %v526
    %718 = vmatpush.bf16.msra.mxu0 %v524
    %719 = vmatpush.bf16.msra.mxu0 %v522
    %720 = vmatmul.bf16.gmra.mxu0 %v170
    %v721 = vpop.f32.mrf.mxu0
    %v722 = vadd.f32 %v709, %v721
    %v723 = vpop.f32.mrf.mxu0
    %724 = vdwg.mxu0
    %725 = vmatpush.bf16.msra.mxu0 %v552
    %726 = vmatpush.bf16.msra.mxu0 %v550
    %727 = vmatpush.bf16.msra.mxu0 %v548
    %728 = vmatpush.bf16.msra.mxu0 %v546
    %729 = vmatpush.bf16.msra.mxu0 %v544
    %730 = vmatpush.bf16.msra.mxu0 %v542
    %731 = vmatpush.bf16.msra.mxu0 %v540
    %732 = vmatpush.bf16.msra.mxu0 %v538
    %733 = vmatmul.bf16.gmra.mxu0 %v171
    %v734 = vpop.f32.mrf.mxu0
    %v735 = vadd.f32 %v722, %v734
    %v736 = vpop.f32.mrf.mxu0
    %737 = vdwg.mxu0
    %738 = vmatpush.bf16.msra.mxu0 %v568
    %739 = vmatpush.bf16.msra.mxu0 %v566
    %740 = vmatpush.bf16.msra.mxu0 %v564
    %741 = vmatpush.bf16.msra.mxu0 %v562
    %742 = vmatpush.bf16.msra.mxu0 %v560
    %743 = vmatpush.bf16.msra.mxu0 %v558
    %744 = vmatpush.bf16.msra.mxu0 %v556
    %745 = vmatpush.bf16.msra.mxu0 %v554
    %746 = vmatmul.bf16.gmra.mxu0 %v172
    %v747 = vpop.f32.mrf.mxu0
    %v748 = vadd.f32 %v735, %v747
    %v749 = vpop.f32.mrf.mxu0
    %750 = vdwg.mxu0
    %751 = vmatpush.bf16.msra.mxu0 0
    %752 = vmatpush.bf16.msra.mxu0 0
    %753 = vmatpush.bf16.msra.mxu0 0
    %754 = vmatpush.bf16.msra.mxu0 0
    %755 = vmatpush.bf16.msra.mxu0 0
    %756 = vmatpush.bf16.msra.mxu0 0
    %757 = vmatpush.bf16.msra.mxu0 0
    %758 = vmatpush.bf16.msra.mxu0 %v570
    %759 = vmatmul.bf16.gmra.mxu0 %v671
    %v760 = vpop.f32.mrf.mxu0
    %v761 = vadd.f32 %v748, %v760
    %v762 = vpop.f32.mrf.mxu0
    %763 = vdwg.mxu0
    %764 = vmatpush.bf16.msra.mxu0 %v489
    %765 = vmatpush.bf16.msra.mxu0 %v487
    %766 = vmatpush.bf16.msra.mxu0 %v485
    %767 = vmatpush.bf16.msra.mxu0 %v483
    %768 = vmatpush.bf16.msra.mxu0 %v481
    %769 = vmatpush.bf16.msra.mxu0 %v479
    %770 = vmatpush.bf16.msra.mxu0 %v477
    %771 = vmatpush.bf16.msra.mxu0 %v475
    %772 = vmatmul.bf16.gmra.mxu0 %v167
    %v773 = vpop.f32.mrf.mxu0
    %v774 = vadd.f32 %v162, %v773
    %v775 = vpop.f32.mrf.mxu0
    %776 = vdwg.mxu0
    %777 = vmatpush.bf16.msra.mxu0 %v505
    %778 = vmatpush.bf16.msra.mxu0 %v503
    %779 = vmatpush.bf16.msra.mxu0 %v501
    %780 = vmatpush.bf16.msra.mxu0 %v499
    %781 = vmatpush.bf16.msra.mxu0 %v497
    %782 = vmatpush.bf16.msra.mxu0 %v495
    %783 = vmatpush.bf16.msra.mxu0 %v493
    %784 = vmatpush.bf16.msra.mxu0 %v491
    %785 = vmatmul.bf16.gmra.mxu0 %v168
    %v786 = vpop.f32.mrf.mxu0
    %v787 = vadd.f32 %v774, %v786
    %v788 = vpop.f32.mrf.mxu0
    %789 = vdwg.mxu0
    %790 = vmatpush.bf16.msra.mxu0 %v521
    %791 = vmatpush.bf16.msra.mxu0 %v519
    %792 = vmatpush.bf16.msra.mxu0 %v517
    %793 = vmatpush.bf16.msra.mxu0 %v515
    %794 = vmatpush.bf16.msra.mxu0 %v513
    %795 = vmatpush.bf16.msra.mxu0 %v511
    %796 = vmatpush.bf16.msra.mxu0 %v509
    %797 = vmatpush.bf16.msra.mxu0 %v507
    %798 = vmatmul.bf16.gmra.mxu0 %v169
    %v799 = vpop.f32.mrf.mxu0
    %v800 = vadd.f32 %v787, %v799
    %v801 = vpop.f32.mrf.mxu0
    %802 = vdwg.mxu0
    %803 = vmatpush.bf16.msra.mxu0 %v537
    %804 = vmatpush.bf16.msra.mxu0 %v535
    %805 = vmatpush.bf16.msra.mxu0 %v533
    %806 = vmatpush.bf16.msra.mxu0 %v531
    %807 = vmatpush.bf16.msra.mxu0 %v529
    %808 = vmatpush.bf16.msra.mxu0 %v527
    %809 = vmatpush.bf16.msra.mxu0 %v525
    %810 = vmatpush.bf16.msra.mxu0 %v523
    %811 = vmatmul.bf16.gmra.mxu0 %v170
    %v812 = vpop.f32.mrf.mxu0
    %v813 = vadd.f32 %v800, %v812
    %v814 = vpop.f32.mrf.mxu0
    %815 = vdwg.mxu0
    %816 = vmatpush.bf16.msra.mxu0 %v553
    %817 = vmatpush.bf16.msra.mxu0 %v551
    %818 = vmatpush.bf16.msra.mxu0 %v549
    %819 = vmatpush.bf16.msra.mxu0 %v547
    %820 = vmatpush.bf16.msra.mxu0 %v545
    %821 = vmatpush.bf16.msra.mxu0 %v543
    %822 = vmatpush.bf16.msra.mxu0 %v541
    %823 = vmatpush.bf16.msra.mxu0 %v539
    %824 = vmatmul.bf16.gmra.mxu0 %v171
    %v825 = vpop.f32.mrf.mxu0
    %v826 = vadd.f32 %v813, %v825
    %v827 = vpop.f32.mrf.mxu0
    %828 = vdwg.mxu0
    %829 = vmatpush.bf16.msra.mxu0 %v569
    %830 = vmatpush.bf16.msra.mxu0 %v567
    %831 = vmatpush.bf16.msra.mxu0 %v565
    %832 = vmatpush.bf16.msra.mxu0 %v563
    %833 = vmatpush.bf16.msra.mxu0 %v561
    %834 = vmatpush.bf16.msra.mxu0 %v559
    %835 = vmatpush.bf16.msra.mxu0 %v557
    %836 = vmatpush.bf16.msra.mxu0 %v555
    %837 = vmatmul.bf16.gmra.mxu0 %v172
    %v838 = vpop.f32.mrf.mxu0
    %v839 = vadd.f32 %v826, %v838
    %v840 = vpop.f32.mrf.mxu0
    %841 = vdwg.mxu0
    %842 = vmatpush.bf16.msra.mxu0 0
    %843 = vmatpush.bf16.msra.mxu0 0
    %844 = vmatpush.bf16.msra.mxu0 0
    %845 = vmatpush.bf16.msra.mxu0 0
    %846 = vmatpush.bf16.msra.mxu0 0
    %847 = vmatpush.bf16.msra.mxu0 0
    %848 = vmatpush.bf16.msra.mxu0 0
    %849 = vmatpush.bf16.msra.mxu0 %v571
    %850 = vmatmul.bf16.gmra.mxu0 %v671
    %v851 = vpop.f32.mrf.mxu0
    %v852 = vadd.f32 %v839, %v851
    %v853 = vpop.f32.mrf.mxu0
    %854 = vdwg.mxu0
    %v855 = vmul.f32 %v761, %v761
    %v856 = vmul.f32 %v852, %v852
    %v857 = vpack.c.bf16 %v855, %v855
    %v858 = vpack.c.bf16 %v856, %v856
    %v859 = vld [vmem:[#allocation5] sm:$0xf]
    %v860 = vld [vmem:[#allocation5 + $0x4] sm:$0xf]
    %v861 = vld [vmem:[#allocation5 + $0x8] sm:$0xf]
    %v862 = vld [vmem:[#allocation5 + $0xc] sm:$0xf]
    %v863 = vld [vmem:[#allocation5 + $0x10] sm:$0xf]
    %v864 = vld [vmem:[#allocation5 + $0x14] sm:$0xf]
    %v865 = vld [vmem:[#allocation5 + $0x18] sm:$0xf]
    %v866 = vld [vmem:[#allocation5 + $0x1c] sm:$0xf]
    %v867 = vld [vmem:[#allocation5 + $0x20] sm:$0xf]
    %v868 = vld [vmem:[#allocation5 + $0x24] sm:$0xf]
    %v869 = vld [vmem:[#allocation5 + $0x28] sm:$0xf]
    %v870 = vld [vmem:[#allocation5 + $0x2c] sm:$0xf]
    %v871 = vld [vmem:[#allocation5 + $0x30] sm:$0xf]
    %v872 = vld [vmem:[#allocation5 + $0x34] sm:$0xf]
    %v873 = vld [vmem:[#allocation5 + $0x38] sm:$0xf]
    %v874 = vld [vmem:[#allocation5 + $0x3c] sm:$0xf]
    %v875 = vld [vmem:[#allocation5 + $0x40] sm:$0xf]
    %v876 = vld [vmem:[#allocation5 + $0x44] sm:$0xf]
    %v877 = vld [vmem:[#allocation5 + $0x48] sm:$0xf]
    %v878 = vld [vmem:[#allocation5 + $0x4c] sm:$0xf]
    %v879 = vld [vmem:[#allocation5 + $0x50] sm:$0xf]
    %v880 = vld [vmem:[#allocation5 + $0x54] sm:$0xf]
    %v881 = vld [vmem:[#allocation5 + $0x58] sm:$0xf]
    %v882 = vld [vmem:[#allocation5 + $0x5c] sm:$0xf]
    %v883 = vld [vmem:[#allocation5 + $0x60] sm:$0xf]
    %v884 = vld [vmem:[#allocation5 + $0x64] sm:$0xf]
    %v885 = vld [vmem:[#allocation5 + $0x68] sm:$0xf]
    %v886 = vld [vmem:[#allocation5 + $0x6c] sm:$0xf]
    %v887 = vld [vmem:[#allocation5 + $0x70] sm:$0xf]
    %v888 = vld [vmem:[#allocation5 + $0x74] sm:$0xf]
    %v889 = vld [vmem:[#allocation5 + $0x78] sm:$0xf]
    %v890 = vld [vmem:[#allocation5 + $0x7c] sm:$0xf]
    %v891 = vld [vmem:[%s4] sm:$0x1]
    %v893 = vperm.slane %v891, 0
    %v927 = vunpack.c.l.b16 %v859
    %v928 = vunpack.c.l.b16 %v860
    %v929 = vunpack.c.l.b16 %v861
    %v930 = vunpack.c.l.b16 %v862
    %v931 = vunpack.c.l.b16 %v863
    %v932 = vunpack.c.l.b16 %v864
    %v933 = vunpack.c.l.b16 %v865
    %v934 = vunpack.c.l.b16 %v866
    %v935 = vunpack.c.l.b16 %v867
    %v936 = vunpack.c.l.b16 %v868
    %v937 = vunpack.c.l.b16 %v869
    %v938 = vunpack.c.l.b16 %v870
    %v939 = vunpack.c.l.b16 %v871
    %v940 = vunpack.c.l.b16 %v872
    %v941 = vunpack.c.l.b16 %v873
    %v942 = vunpack.c.l.b16 %v874
    %v943 = vunpack.c.l.b16 %v875
    %v944 = vunpack.c.l.b16 %v876
    %v945 = vunpack.c.l.b16 %v877
    %v946 = vunpack.c.l.b16 %v878
    %v947 = vunpack.c.l.b16 %v879
    %v948 = vunpack.c.l.b16 %v880
    %v949 = vunpack.c.l.b16 %v881
    %v950 = vunpack.c.l.b16 %v882
    %v951 = vunpack.c.l.b16 %v883
    %v952 = vunpack.c.l.b16 %v884
    %v953 = vunpack.c.l.b16 %v885
    %v954 = vunpack.c.l.b16 %v886
    %v955 = vunpack.c.l.b16 %v887
    %v956 = vunpack.c.l.b16 %v888
    %v957 = vunpack.c.l.b16 %v889
    %v958 = vunpack.c.l.b16 %v890
    %v959 = vpack.c.b16 %v928, %v927
    %v960 = vpack.c.b16 %v930, %v929
    %v961 = vpack.c.b16 %v932, %v931
    %v962 = vpack.c.b16 %v934, %v933
    %v963 = vpack.c.b16 %v936, %v935
    %v964 = vpack.c.b16 %v938, %v937
    %v965 = vpack.c.b16 %v940, %v939
    %v966 = vpack.c.b16 %v942, %v941
    %v967 = vpack.c.b16 %v944, %v943
    %v968 = vpack.c.b16 %v946, %v945
    %v969 = vpack.c.b16 %v948, %v947
    %v970 = vpack.c.b16 %v950, %v949
    %v971 = vpack.c.b16 %v952, %v951
    %v972 = vpack.c.b16 %v954, %v953
    %v973 = vpack.c.b16 %v956, %v955
    %v974 = vpack.c.b16 %v958, %v957
    %991 = vmatpush.bf16.msra.mxu0 %v966
    %992 = vmatpush.bf16.msra.mxu0 %v965
    %993 = vmatpush.bf16.msra.mxu0 %v964
    %994 = vmatpush.bf16.msra.mxu0 %v963
    %995 = vmatpush.bf16.msra.mxu0 %v962
    %996 = vmatpush.bf16.msra.mxu0 %v961
    %997 = vmatpush.bf16.msra.mxu0 %v960
    %998 = vmatpush.bf16.msra.mxu0 %v959
    %999 = vmatmul.bf16.gmra.mxu0 %v857
    %v1000 = vpop.f32.mrf.mxu0
    %v1001 = vadd.f32 %v893, %v1000
    %v1002 = vpop.f32.mrf.mxu0
    %1003 = vdwg.mxu0
    %1004 = vmatpush.bf16.msra.mxu0 %v974
    %1005 = vmatpush.bf16.msra.mxu0 %v973
    %1006 = vmatpush.bf16.msra.mxu0 %v972
    %1007 = vmatpush.bf16.msra.mxu0 %v971
    %1008 = vmatpush.bf16.msra.mxu0 %v970
    %1009 = vmatpush.bf16.msra.mxu0 %v969
    %1010 = vmatpush.bf16.msra.mxu0 %v968
    %1011 = vmatpush.bf16.msra.mxu0 %v967
    %1012 = vmatmul.bf16.gmra.mxu0 %v858
    %v1013 = vpop.f32.mrf.mxu0
    %v1014 = vadd.f32 %v1001, %v1013
    %v1015 = vpop.f32.mrf.mxu0
    %1016 = vdwg.mxu0
    %v1017 = vmul.f32 %v1014, %v1014
    %v1018 = vpack.c.bf16 %v1017, %v1017
    %v1019 = vld [vmem:[%s5] sm:$0xf]
    %v1020 = vld [vmem:[%s5 + $0x4] sm:$0xf]
    %v1021 = vld [vmem:[%s5 + $0x8] sm:$0xf]
    %v1022 = vld [vmem:[%s5 + $0xc] sm:$0xf]
    %v1023 = vld [vmem:[%s5 + $0x10] sm:$0xf]
    %v1024 = vld [vmem:[%s5 + $0x14] sm:$0xf]
    %v1025 = vld [vmem:[%s5 + $0x18] sm:$0xf]
    %v1026 = vld [vmem:[%s5 + $0x1c] sm:$0xf]
    %v1027 = vld [vmem:[%s5 + $0x20] sm:$0xf]
    %v1028 = vld [vmem:[%s5 + $0x24] sm:$0xf]
    %v1029 = vld [vmem:[%s5 + $0x28] sm:$0xf]
    %v1030 = vld [vmem:[%s5 + $0x2c] sm:$0xf]
    %v1031 = vld [vmem:[%s5 + $0x30] sm:$0xf]
    %v1032 = vld [vmem:[%s5 + $0x34] sm:$0xf]
    %v1033 = vld [vmem:[%s5 + $0x38] sm:$0xf]
    %v1034 = vld [vmem:[%s5 + $0x3c] sm:$0xf]
    %v1035 = vld [vmem:[%s6] sm:$0x1]
    %v1037 = vperm.slane %v1035, 0
    %v1055 = vunpack.c.l.b16 %v1019
    %v1056 = vunpack.c.l.b16 %v1020
    %v1057 = vunpack.c.l.b16 %v1021
    %v1058 = vunpack.c.l.b16 %v1022
    %v1059 = vunpack.c.l.b16 %v1023
    %v1060 = vunpack.c.l.b16 %v1024
    %v1061 = vunpack.c.l.b16 %v1025
    %v1062 = vunpack.c.l.b16 %v1026
    %v1063 = vunpack.c.l.b16 %v1027
    %v1064 = vunpack.c.l.b16 %v1028
    %v1065 = vunpack.c.l.b16 %v1029
    %v1066 = vunpack.c.l.b16 %v1030
    %v1067 = vunpack.c.l.b16 %v1031
    %v1068 = vunpack.c.l.b16 %v1032
    %v1069 = vunpack.c.l.b16 %v1033
    %v1070 = vunpack.c.l.b16 %v1034
    %v1071 = vpack.c.b16 %v1056, %v1055
    %v1072 = vpack.c.b16 %v1058, %v1057
    %v1073 = vpack.c.b16 %v1060, %v1059
    %v1074 = vpack.c.b16 %v1062, %v1061
    %v1075 = vpack.c.b16 %v1064, %v1063
    %v1076 = vpack.c.b16 %v1066, %v1065
    %v1077 = vpack.c.b16 %v1068, %v1067
    %v1078 = vpack.c.b16 %v1070, %v1069
    %1087 = vmatpush.bf16.msra.mxu0 %v1078
    %1088 = vmatpush.bf16.msra.mxu0 %v1077
    %1089 = vmatpush.bf16.msra.mxu0 %v1076
    %1090 = vmatpush.bf16.msra.mxu0 %v1075
    %1091 = vmatpush.bf16.msra.mxu0 %v1074
    %1092 = vmatpush.bf16.msra.mxu0 %v1073
    %1093 = vmatpush.bf16.msra.mxu0 %v1072
    %1094 = vmatpush.bf16.msra.mxu0 %v1071
    %1095 = vmatmul.bf16.gmra.mxu0 %v1018
    %v1096 = vpop.f32.mrf.mxu0
    %v1097 = vadd.f32 %v1037, %v1096
    %v1098 = vpop.f32.mrf.mxu0
    %1099 = vdwg.mxu0
    %1100 = vst [vmem:[#allocation7] sm:$0x3] %v1097
    // Predicated region
    $region38: #{convnet_forward.1} parent=1 // pred_check
      _
    $region39: #{convnet_forward.1} parent=1 // pred_check_branch
      %1102 = sbr.rel (0) target = $region41
    $region40: #{convnet_forward.1} parent=1 // pred_region
      %1104 = vsyncadd [#allocation4], 0
      %s1106 = sshll.u32 [#allocation7], 4
      %s1107 = int_to_ptr.vmem [resolvable:$true] %s1106
      %s1108 = sshll.u32 %s7, 4
      %s1109 = int_to_ptr.hbm [resolvable:$true] %s1108
      %1111 = dma.vmem_to_hbm [thread:$0]  %s1107, 32, %s1109, [#allocation4]
    $region41: #{convnet_forward.1} parent=1 // pred_fallthru
      _
    // Predicated region
    $region42: #{convnet_forward.1} parent=1 // pred_check
      _
    $region43: #{convnet_forward.1} parent=1 // pred_check_branch
      %1113 = sbr.rel (0) target = $region45
    $region44: #{convnet_forward.1} parent=1 // pred_region
      %1115 = dma.done [#allocation4], 32
    $region45: #{convnet_forward.1} parent=1 // pred_fallthru
      _
    %1116 = vsyncpa [#allocation3], 1
    %1117 = vsyncpa [#allocation6], 1
    %1118 = vsyncpa [#allocation4], 1

</llo_original>
